<compile_context>
chip_gen: v5e
topology: v5e:2x2
jax: 0.10.0
libtpu: 0.0.40
codegen_flags: <defaults>
</compile_context>

<pallas_src>
import functools

import jax
import jax.numpy as jnp
from jax.experimental import pallas as pl
from jax.experimental.pallas import tpu as pltpu


def _ce_loss_kernel(cosine_ref, label_ref, out_ref, m_scr, l_scr, t_scr, acc_scr,
                    *, batch):
    """Grid = (batch_tiles, class_tiles); class axis innermost (reduction)."""
    i = pl.program_id(0)          # batch-tile index
    j = pl.program_id(1)          # class-tile index
    nb = pl.num_programs(0)
    nc = pl.num_programs(1)

    # ---- init global loss accumulator once, per-row state per batch tile ----
    @pl.when((i == 0) & (j == 0))
    def _():
        acc_scr[0] = jnp.float32(0.0)

    @pl.when(j == 0)
    def _():
        m_scr[...] = jnp.full(m_scr.shape, -jnp.inf, jnp.float32)
        l_scr[...] = jnp.zeros(l_scr.shape, jnp.float32)
        t_scr[...] = jnp.zeros(t_scr.shape, jnp.float32)

    logits = cosine_ref[...].astype(jnp.float32)            # [TB, TC]
    tb, tc = logits.shape

    # ---- online (streaming) log-sum-exp over the class axis ----
    tile_max = jnp.max(logits, axis=-1, keepdims=True)      # [TB, 1]
    m_new = jnp.maximum(m_scr[...], tile_max)                # [TB, 1]
    alpha = jnp.exp(m_scr[...] - m_new)                      # rescale old partial sum
    l_scr[...] = alpha * l_scr[...] + jnp.sum(
        jnp.exp(logits - m_new), axis=-1, keepdims=True)
    m_scr[...] = m_new

    # ---- gather target-class logit for classes living in this tile ----
    col = jax.lax.broadcasted_iota(jnp.int32, (tb, tc), 1) + j * tc
    eq = col == label_ref[...]                               # [TB, TC] (bcast [TB,1])
    t_scr[...] = t_scr[...] + jnp.sum(
        jnp.where(eq, logits, 0.0), axis=-1, keepdims=True)

    # ---- after the last class tile: finish this batch tile's contribution ----
    @pl.when(j == nc - 1)
    def _():
        lse = m_scr[...] + jnp.log(l_scr[...])               # [TB, 1]
        acc_scr[0] = acc_scr[0] + jnp.sum(lse - t_scr[...])

    # ---- very last grid step: write the scalar loss (sum / batch) ----
    @pl.when((i == nb - 1) & (j == nc - 1))
    def _():
        out_ref[0, 0] = acc_scr[0] / jnp.float32(batch)


def _pick_tile(dim, target, multiple):
    """Largest tile <= target that evenly divides `dim`.

    Prefers multiples of `multiple` (8 for sublanes, 128 for lanes) so the
    BlockSpec (8,128) constraint is satisfied; falls back to the full dim.
    """
    if dim <= target:
        return dim
    best = None
    t = multiple
    while t <= target:
        if dim % t == 0:
            best = t
        t += multiple
    return best if best is not None else dim


def ce_loss(cosine, label, *, tb=None, tc=None):
    """cosine: [B, C] float logits; label: [B] int class ids -> scalar f32 loss."""
    B, C = cosine.shape
    if tb is None:
        tb = _pick_tile(B, 256, 8)       # batch tile
    if tc is None:
        tc = _pick_tile(C, 2048, 128)    # class tile (~2 MiB f32 at 256x2048)
    assert B % tb == 0 and C % tc == 0, (B, C, tb, tc)

    label2d = label.astype(jnp.int32).reshape(B, 1)
    grid = (B // tb, C // tc)

    kernel = functools.partial(_ce_loss_kernel, batch=B)
    out = pl.pallas_call(
        kernel,
        out_shape=jax.ShapeDtypeStruct((1, 1), jnp.float32),
        grid=grid,
        in_specs=[
            pl.BlockSpec((tb, tc), lambda i, j: (i, j)),     # logits tile
            pl.BlockSpec((tb, 1), lambda i, j: (i, 0)),      # labels for this batch tile
        ],
        out_specs=pl.BlockSpec(memory_space=pltpu.SMEM),     # scalar, resident
        scratch_shapes=[
            pltpu.VMEM((tb, 1), jnp.float32),                # running max m
            pltpu.VMEM((tb, 1), jnp.float32),                # running sum l
            pltpu.VMEM((tb, 1), jnp.float32),                # running target logit
            pltpu.SMEM((1,), jnp.float32),                   # global loss accumulator
        ],
        compiler_params=pltpu.CompilerParams(
            dimension_semantics=("arbitrary", "arbitrary"),
            vmem_limit_bytes=48 * 1024 * 1024,
        ),
    )(cosine, label2d)
    return out[0, 0]


def ce_loss_ref(cosine, label):
    """Pure-JAX reference (torch CrossEntropyLoss(reduction='sum') / B)."""
    logits = cosine.astype(jnp.float32)
    logz = jax.scipy.special.logsumexp(logits, axis=-1)
    tgt = jnp.take_along_axis(logits, label[:, None].astype(jnp.int32), axis=-1)[:, 0]
    return jnp.sum(logz - tgt) / cosine.shape[0]


if __name__ == "__main__":
    key = jax.random.PRNGKey(0)
    k1, k2, k3, k4 = jax.random.split(key, 4)

    # Case 1: nominal small shape (single tile, grid = (1, 1)).
    B, C = 8, 32
    cosine = jax.random.normal(k1, (B, C), dtype=jnp.float32)
    label = jax.random.randint(k2, (B,), 0, C, dtype=jnp.int32)
    loss = ce_loss(cosine, label)
    jax.block_until_ready(loss)
    ref = ce_loss_ref(cosine, label)
    assert jnp.allclose(loss, ref, rtol=1e-5, atol=1e-5), (loss, ref)

    # Case 2: force a multi-tile grid (2 batch tiles x 2 class tiles) to
    # exercise the online-LSE + cross-tile accumulation path.
    B2, C2 = 16, 256
    cosine2 = jax.random.normal(k3, (B2, C2), dtype=jnp.float32)
    label2 = jax.random.randint(k4, (B2,), 0, C2, dtype=jnp.int32)
    loss2 = ce_loss(cosine2, label2, tb=8, tc=128)
    jax.block_until_ready(loss2)
    ref2 = ce_loss_ref(cosine2, label2)
    assert jnp.allclose(loss2, ref2, rtol=1e-5, atol=1e-5), (loss2, ref2)

    print("KERNEL_OK")
</pallas_src>

<mosaic_0001>
module attributes {stable_mosaic.version = 11 : i64} {
  func.func @_ce_loss_kernel(%arg0: i32, %arg1: i32, %arg2: memref<8x32xf32, #tpu.memory_space<vmem>>, %arg3: memref<8x1xi32, #tpu.memory_space<vmem>>, %arg4: memref<1x1xf32, #tpu.memory_space<smem>>, %arg5: memref<8x1xf32, #tpu.memory_space<vmem>>, %arg6: memref<8x1xf32, #tpu.memory_space<vmem>>, %arg7: memref<8x1xf32, #tpu.memory_space<vmem>>, %arg8: memref<1xf32, #tpu.memory_space<smem>>) attributes {dimension_semantics = [#tpu.dimension_semantics<arbitrary>, #tpu.dimension_semantics<arbitrary>], iteration_bounds = array<i64: 1, 1>, scalar_prefetch = 0 : i64, scratch_operands = 4 : i64, tpu.core_type = #tpu.core_type<tc>, window_params = [{transform_indices = @transform_0, window_bounds = array<i64: 8, 32>}, {transform_indices = @transform_1, window_bounds = array<i64: 8, 1>}, {transform_indices = @transform_2, window_bounds = array<i64: 1, 1>}]} {
    %c0_i32 = arith.constant 0 : i32
    %0 = arith.cmpi eq, %arg0, %c0_i32 : i32
    %c0_i32_0 = arith.constant 0 : i32
    %1 = arith.cmpi eq, %arg1, %c0_i32_0 : i32
    %2 = arith.andi %0, %1 : i1
    %3 = arith.extui %2 : i1 to i32
    %c0_i32_1 = arith.constant 0 : i32
    %4 = arith.cmpi ne, %3, %c0_i32_1 : i32
    scf.if %4 {
      %cst_29 = arith.constant 0.000000e+00 : f32
      %c0_30 = arith.constant 0 : index
      %48 = memref.load %arg8[%c0_30] : memref<1xf32, #tpu.memory_space<smem>>
      memref.store %cst_29, %arg8[%c0_30] : memref<1xf32, #tpu.memory_space<smem>>
    } else {
    }
    %c0_i32_2 = arith.constant 0 : i32
    %5 = arith.cmpi eq, %arg1, %c0_i32_2 : i32
    %6 = arith.extui %5 : i1 to i32
    %c0_i32_3 = arith.constant 0 : i32
    %7 = arith.cmpi ne, %6, %c0_i32_3 : i32
    scf.if %7 {
      %cst_29 = arith.constant 0xFF800000 : f32
      %48 = vector.broadcast %cst_29 : f32 to vector<8x1xf32>
      %c0_30 = arith.constant 0 : index
      %c0_31 = arith.constant 0 : index
      %49 = vector.load %arg5[%c0_30, %c0_31] : memref<8x1xf32, #tpu.memory_space<vmem>>, vector<8x1xf32>
      tpu.vector_store %arg5[%c0_30, %c0_31], %48 {strides = array<i32>} : memref<8x1xf32, #tpu.memory_space<vmem>>, vector<8x1xf32>,
      %cst_32 = arith.constant 0.000000e+00 : f32
      %50 = vector.broadcast %cst_32 : f32 to vector<8x1xf32>
      %c0_33 = arith.constant 0 : index
      %c0_34 = arith.constant 0 : index
      %51 = vector.load %arg6[%c0_33, %c0_34] : memref<8x1xf32, #tpu.memory_space<vmem>>, vector<8x1xf32>
      tpu.vector_store %arg6[%c0_33, %c0_34], %50 {strides = array<i32>} : memref<8x1xf32, #tpu.memory_space<vmem>>, vector<8x1xf32>,
      %cst_35 = arith.constant 0.000000e+00 : f32
      %52 = vector.broadcast %cst_35 : f32 to vector<8x1xf32>
      %c0_36 = arith.constant 0 : index
      %c0_37 = arith.constant 0 : index
      %53 = vector.load %arg7[%c0_36, %c0_37] : memref<8x1xf32, #tpu.memory_space<vmem>>, vector<8x1xf32>
      tpu.vector_store %arg7[%c0_36, %c0_37], %52 {strides = array<i32>} : memref<8x1xf32, #tpu.memory_space<vmem>>, vector<8x1xf32>,
    } else {
    }
    %c0 = arith.constant 0 : index
    %c0_4 = arith.constant 0 : index
    %8 = vector.load %arg2[%c0, %c0_4] : memref<8x32xf32, #tpu.memory_space<vmem>>, vector<8x32xf32>
    %cst = arith.constant dense<0xFF800000> : vector<8xf32>
    %9 = vector.multi_reduction <maximumf>, %8, %cst [1] : vector<8x32xf32> to vector<8xf32>
    %10 = vector.shape_cast %9 : vector<8xf32> to vector<8x1xf32>
    %c0_5 = arith.constant 0 : index
    %c0_6 = arith.constant 0 : index
    %11 = vector.load %arg5[%c0_5, %c0_6] : memref<8x1xf32, #tpu.memory_space<vmem>>, vector<8x1xf32>
    %12 = arith.maximumf %11, %10 : vector<8x1xf32>
    %c0_7 = arith.constant 0 : index
    %c0_8 = arith.constant 0 : index
    %13 = vector.load %arg5[%c0_7, %c0_8] : memref<8x1xf32, #tpu.memory_space<vmem>>, vector<8x1xf32>
    %14 = arith.subf %13, %12 : vector<8x1xf32>
    %15 = math.exp %14 : vector<8x1xf32>
    %c0_9 = arith.constant 0 : index
    %c0_10 = arith.constant 0 : index
    %16 = vector.load %arg6[%c0_9, %c0_10] : memref<8x1xf32, #tpu.memory_space<vmem>>, vector<8x1xf32>
    %17 = arith.mulf %15, %16 : vector<8x1xf32>
    %18 = vector.broadcast %12 : vector<8x1xf32> to vector<8x32xf32>
    %19 = arith.subf %8, %18 : vector<8x32xf32>
    %20 = math.exp %19 : vector<8x32xf32>
    %cst_11 = arith.constant dense<0.000000e+00> : vector<8xf32>
    %21 = vector.multi_reduction <add>, %20, %cst_11 [1] : vector<8x32xf32> to vector<8xf32>
    %22 = vector.shape_cast %21 : vector<8xf32> to vector<8x1xf32>
    %23 = arith.addf %17, %22 : vector<8x1xf32>
    %c0_12 = arith.constant 0 : index
    %c0_13 = arith.constant 0 : index
    %24 = vector.load %arg6[%c0_12, %c0_13] : memref<8x1xf32, #tpu.memory_space<vmem>>, vector<8x1xf32>
    tpu.vector_store %arg6[%c0_12, %c0_13], %23 {strides = array<i32>} : memref<8x1xf32, #tpu.memory_space<vmem>>, vector<8x1xf32>,
    %c0_14 = arith.constant 0 : index
    %c0_15 = arith.constant 0 : index
    %25 = vector.load %arg5[%c0_14, %c0_15] : memref<8x1xf32, #tpu.memory_space<vmem>>, vector<8x1xf32>
    tpu.vector_store %arg5[%c0_14, %c0_15], %12 {strides = array<i32>} : memref<8x1xf32, #tpu.memory_space<vmem>>, vector<8x1xf32>,
    %26 = tpu.iota {dimensions = array<i32: 1>} : vector<8x32xi32>
    %c32_i32 = arith.constant 32 : i32
    %27 = arith.muli %arg1, %c32_i32 : i32
    %28 = vector.broadcast %27 : i32 to vector<8x32xi32>
    %29 = arith.addi %26, %28 : vector<8x32xi32>
    %c0_16 = arith.constant 0 : index
    %c0_17 = arith.constant 0 : index
    %30 = vector.load %arg3[%c0_16, %c0_17] : memref<8x1xi32, #tpu.memory_space<vmem>>, vector<8x1xi32>
    %31 = vector.broadcast %30 : vector<8x1xi32> to vector<8x32xi32>
    %32 = arith.cmpi eq, %29, %31 : vector<8x32xi32>
    %c0_18 = arith.constant 0 : index
    %c0_19 = arith.constant 0 : index
    %33 = vector.load %arg7[%c0_18, %c0_19] : memref<8x1xf32, #tpu.memory_space<vmem>>, vector<8x1xf32>
    %cst_20 = arith.constant 0.000000e+00 : f32
    %34 = vector.broadcast %cst_20 : f32 to vector<8x32xf32>
    %35 = arith.select %32, %8, %34 : vector<8x32xi1>, vector<8x32xf32>
    %cst_21 = arith.constant dense<0.000000e+00> : vector<8xf32>
    %36 = vector.multi_reduction <add>, %35, %cst_21 [1] : vector<8x32xf32> to vector<8xf32>
    %37 = vector.shape_cast %36 : vector<8xf32> to vector<8x1xf32>
    %38 = arith.addf %33, %37 : vector<8x1xf32>
    %c0_22 = arith.constant 0 : index
    %c0_23 = arith.constant 0 : index
    %39 = vector.load %arg7[%c0_22, %c0_23] : memref<8x1xf32, #tpu.memory_space<vmem>>, vector<8x1xf32>
    tpu.vector_store %arg7[%c0_22, %c0_23], %38 {strides = array<i32>} : memref<8x1xf32, #tpu.memory_space<vmem>>, vector<8x1xf32>,
    %c0_i32_24 = arith.constant 0 : i32
    %40 = arith.cmpi eq, %arg1, %c0_i32_24 : i32
    %41 = arith.extui %40 : i1 to i32
    %c0_i32_25 = arith.constant 0 : i32
    %42 = arith.cmpi ne, %41, %c0_i32_25 : i32
    scf.if %42 {
      %c0_29 = arith.constant 0 : index
      %c0_30 = arith.constant 0 : index
      %48 = vector.load %arg5[%c0_29, %c0_30] : memref<8x1xf32, #tpu.memory_space<vmem>>, vector<8x1xf32>
      %c0_31 = arith.constant 0 : index
      %c0_32 = arith.constant 0 : index
      %49 = vector.load %arg6[%c0_31, %c0_32] : memref<8x1xf32, #tpu.memory_space<vmem>>, vector<8x1xf32>
      %50 = math.log %49 : vector<8x1xf32>
      %51 = arith.addf %48, %50 : vector<8x1xf32>
      %c0_33 = arith.constant 0 : index
      %52 = memref.load %arg8[%c0_33] : memref<1xf32, #tpu.memory_space<smem>>
      %c0_34 = arith.constant 0 : index
      %c0_35 = arith.constant 0 : index
      %53 = vector.load %arg7[%c0_34, %c0_35] : memref<8x1xf32, #tpu.memory_space<vmem>>, vector<8x1xf32>
      %54 = arith.subf %51, %53 : vector<8x1xf32>
      %55 = vector.shape_cast %54 : vector<8x1xf32> to vector<1x8x1xf32>
      %cst_36 = arith.constant dense<0.000000e+00> : vector<1xf32>
      %56 = vector.multi_reduction <add>, %55, %cst_36 [1, 2] : vector<1x8x1xf32> to vector<1xf32>
      %57 = vector.shape_cast %56 : vector<1xf32> to vector<1x1x1xf32>
      %58 = vector.extract %57[0, 0, 0] : f32 from vector<1x1x1xf32>
      %59 = arith.addf %52, %58 : f32
      %c0_37 = arith.constant 0 : index
      %60 = memref.load %arg8[%c0_37] : memref<1xf32, #tpu.memory_space<smem>>
      memref.store %59, %arg8[%c0_37] : memref<1xf32, #tpu.memory_space<smem>>
    } else {
    }
    %c0_i32_26 = arith.constant 0 : i32
    %43 = arith.cmpi eq, %arg0, %c0_i32_26 : i32
    %c0_i32_27 = arith.constant 0 : i32
    %44 = arith.cmpi eq, %arg1, %c0_i32_27 : i32
    %45 = arith.andi %43, %44 : i1
    %46 = arith.extui %45 : i1 to i32
    %c0_i32_28 = arith.constant 0 : i32
    %47 = arith.cmpi ne, %46, %c0_i32_28 : i32
    scf.if %47 {
      %c0_29 = arith.constant 0 : index
      %48 = memref.load %arg8[%c0_29] : memref<1xf32, #tpu.memory_space<smem>>
      %cst_30 = arith.constant 8.000000e+00 : f32
      %49 = arith.divf %48, %cst_30 : f32
      %c0_31 = arith.constant 0 : index
      %c0_32 = arith.constant 0 : index
      %50 = memref.load %arg4[%c0_31, %c0_32] : memref<1x1xf32, #tpu.memory_space<smem>>
      memref.store %49, %arg4[%c0_31, %c0_32] : memref<1x1xf32, #tpu.memory_space<smem>>
    } else {
    }
    return
  }
  func.func @transform_0(%arg0: i32, %arg1: i32) -> (i32, i32) {
    %c0_i32 = arith.constant 0 : i32
    return %arg0, %arg1 : i32, i32
  }
  func.func @transform_1(%arg0: i32, %arg1: i32) -> (i32, i32) {
    %c0_i32 = arith.constant 0 : i32
    %c0_i32_0 = arith.constant 0 : i32
    return %arg0, %c0_i32 : i32, i32
  }
  func.func @transform_2(%arg0: i32, %arg1: i32) -> (i32, i32) {
    %c0_i32 = arith.constant 0 : i32
    %c0_i32_0 = arith.constant 0 : i32
    %c0_i32_1 = arith.constant 0 : i32
    return %c0_i32, %c0_i32_0 : i32, i32
  }
}

</mosaic_0001>

<llo_original>
// kernel: tpu_custom_call.1
$region0: #{tpu_custom_call.1}
  #allocation0 [shape = 'u32[]', space=smem, size = 0x4, offset = 0x4, fixed_abs, tag = 'smem constant byte address 0x4 - core index']
  #allocation1 [shape = 'u32[72,128]{1,0:T(1,128)}', space=vmem, size = 0x9000, scoped, tag = 'internal scratch']
  #allocation2 [shape = 'f32[8,1]{1,0:T(8,128)}', space=vmem, size = 0x1000, scoped, tag = 'scratch operand']
  #allocation3 [shape = 'f32[8,1]{1,0:T(8,128)}', space=vmem, size = 0x1000, scoped, tag = 'scratch operand']
  #allocation4 [shape = 'f32[8,1]{1,0:T(8,128)}', space=vmem, size = 0x1000, scoped, tag = 'scratch operand']
  #allocation5 [shape = 'f32[1]{0:T(128)}', space=smem, size = 0x200, scoped, tag = 'scratch operand']
  %s0 = inlined_call_operand.vmem [shape: f32[8,32], index: 0, kind: input, shape index: {}]
  %s1 = inlined_call_operand.vmem [shape: s32[8,1], index: 1, kind: input, shape index: {}]
  %s2 = inlined_call_operand.hbm [shape: f32[1,1], index: 2, kind: output, shape index: {}]
  %s3 = sld [smem:[#allocation0]]
  $region34: #{tpu_custom_call.1} parent=0
    _
  %s5 = ssub.s32 1, %s3
  %s6 = scalar_select 0, %s5, %s3
  $region1: #{tpu_custom_call.1} parent=0
    #allocation6 [shape = 'u8[512]{0}', space=smem, size = 0x200, scoped, tag = 'output window, operand 0, single buffered']
    #allocation7 [shape = 's32[1]{0}', space=sflag, size = 0x4, scoped, tag = 'scoped memory for tpu_custom_call.1']
    %7 = vsyncpa [#allocation7], 0
    // Predicated region
    $region2: #{tpu_custom_call.1} parent=1 // pred_check
      _
    $region3: #{tpu_custom_call.1} parent=1 // pred_check_branch
      %9 = sbr.rel (0) target = $region5
    $region4: #{tpu_custom_call.1} parent=1 // pred_region
      _
    $region5: #{tpu_custom_call.1} parent=1 // pred_fallthru
      _
    // Predicated region
    $region6: #{tpu_custom_call.1} parent=1 // pred_check
      _
    $region7: #{tpu_custom_call.1} parent=1 // pred_check_branch
      %11 = sbr.rel (0) target = $region9
    $region8: #{tpu_custom_call.1} parent=1 // pred_region
      _
    $region9: #{tpu_custom_call.1} parent=1 // pred_fallthru
      _
    %p12 = scmp.eq.s32.totalorder 0, 0
    %p13 = scmp.eq.s32.totalorder 0, 0
    %p14 = pnand %p12, %p13
    %p15 = pneg %p14
    // Predicated region
    $region10: #{tpu_custom_call.1} parent=1 // pred_check
      _
    $region11: #{tpu_custom_call.1} parent=1 // pred_check_branch
      %17 = sbr.rel (%p14) target = $region13
    $region12: #{tpu_custom_call.1} parent=1 // pred_region
      %s18 = scalar_lea.smem [#allocation5], 0
      %19 = sst [smem:[%s18]] 0.0
    $region13: #{tpu_custom_call.1} parent=1 // pred_fallthru
      _
    // Predicated region
    $region14: #{tpu_custom_call.1} parent=1 // pred_check
      %p20 = pneg %p13
    $region15: #{tpu_custom_call.1} parent=1 // pred_check_branch
      %22 = sbr.rel (%p20) target = $region17
    $region16: #{tpu_custom_call.1} parent=1 // pred_region
      %vm23 = vcmask 7168
      %24 = vst.msk [vmem:[#allocation2] sm:$0xff] %vm23, -inf
      %25 = vst.msk [vmem:[#allocation3] sm:$0xff] %vm23, 0.0
      %26 = vst.msk [vmem:[#allocation4] sm:$0xff] %vm23, 0.0
    $region17: #{tpu_custom_call.1} parent=1 // pred_fallthru
      _
    %v27 = vld [vmem:[%s0] sm:$0xff]
    %vm28 = vcmask 261120
    %v29 = vsel %vm28, %v27, -inf
    %30 = vmax.xlane.f32.xlu0 %v29
    %v31 = vpop.xlane.xlu0 %30
    %v32 = vld [vmem:[#allocation2] sm:$0xff]
    %v33 = vmax.f32 %v32, %v31
    %v34 = vsub.f32 %v32, %v33
    %v35 = vmul.f32 %v34, 1.442695
    %v36 = vpow.pop %v35
    %v37 = vld [vmem:[#allocation3] sm:$0xff]
    %v38 = vmul.f32 %v36, %v37
    %40 = vset.pattern.permute.xlu0 0
    %41 = vperm.xlu0 %40, %v33
    %v42 = vpop.permute.xlu0 %41
    %v44 = vsub.f32 %v27, %v42
    %v45 = vmul.f32 %v44, 1.442695
    %v46 = vpow.pop %v45
    %v47 = vsel %vm28, %v46, 0.0
    %48 = vadd.xlane.f32.xlu0 %v47
    %v49 = vpop.xlane.xlu0 %48
    %v50 = vadd.f32 %v38, %v49
    %vm51 = vcmask 7168
    %52 = vst.msk [vmem:[#allocation3] sm:$0xff] %vm51, %v50
    %53 = vst.msk [vmem:[#allocation2] sm:$0xff] %vm51, %v33
    %v54 = vlaneseq
    %v55 = vand.u32 %v54, 127
    %s56 = smul.u32 0, 32
    %v57 = vstv %s56
    %v58 = vadd.s32 %v55, %v57
    %v59 = vld [vmem:[%s1] sm:$0xff]
    %60 = vset.pattern.permute.xlu0 0
    %61 = vperm.xlu0 %60, %v59
    %v62 = vpop.permute.xlu0 %61
    %vm63 = vcmp.eq.s32.totalorder %v58, %v62
    %v64 = vld [vmem:[#allocation4] sm:$0xff]
    %v65 = vsel %vm63, %v27, 0.0
    %v66 = vsel %vm28, %v65, 0.0
    %67 = vadd.xlane.f32.xlu0 %v66
    %v68 = vpop.xlane.xlu0 %67
    %v69 = vadd.f32 %v64, %v68
    %70 = vst.msk [vmem:[#allocation4] sm:$0xff] %vm51, %v69
    // Predicated region
    $region18: #{tpu_custom_call.1} parent=1 // pred_check
      %p71 = pneg %p13
    $region19: #{tpu_custom_call.1} parent=1 // pred_check_branch
      %73 = sbr.rel (%p71) target = $region21
    $region20: #{tpu_custom_call.1} parent=1 // pred_region
      %v74 = vld [vmem:[#allocation2] sm:$0xff]
      %v75 = vld [vmem:[#allocation3] sm:$0xff]
      %v76 = vlog2.pop %v75
      %v77 = vmul.f32 %v76, 0.6931472
      %v78 = vadd.f32 %v74, %v77
      %s79 = sld [smem:[#allocation5]]
      %v80 = vld [vmem:[#allocation4] sm:$0xff]
      %v81 = vsub.f32 %v78, %v80
      %v82 = vsel %vm51, %v81, 0.0
      %83 = vadd.xlane.f32.xlu0 %v82
      %v84 = vpop.xlane.xlu0 %83
      %v85 = vrot.slane %v84, 4
      %v86 = vadd.f32 %v84, %v85
      %v87 = vrot.slane %v86, 2
      %v88 = vadd.f32 %v86, %v87
      %v89 = vrot.slane %v88, 1
      %v90 = vadd.f32 %v88, %v89
      %s91 = vtos %v90
      %s92 = sadd.f32 %s79, %s91
      %s93 = scalar_lea.smem [#allocation5], 0
      %94 = sst [smem:[%s93]] %s92
    $region21: #{tpu_custom_call.1} parent=1 // pred_fallthru
      _
    // Predicated region
    $region22: #{tpu_custom_call.1} parent=1 // pred_check
      _
    $region23: #{tpu_custom_call.1} parent=1 // pred_check_branch
      %96 = sbr.rel (%p14) target = $region25
    $region24: #{tpu_custom_call.1} parent=1 // pred_region
      %s97 = sld [smem:[#allocation5]]
      %v98 = vrcp.pop 8.0
      %v99 = vmul.f32 8.0, %v98
      %v100 = vsub.f32 1.0, %v99
      %v101 = vmul.f32 %v98, %v100
      %v102 = vadd.f32 %v98, %v101
      %vm103 = vweird.f32 %v98
      %v104 = vsel %vm103, %v98, %v102
      %s105 = vtos %v104
      %s106 = smul.f32 %s97, %s105
      %s107 = scalar_lea.smem [#allocation6], 0
      %108 = sst [smem:[%s107]] %s106
    $region25: #{tpu_custom_call.1} parent=1 // pred_fallthru
      _
    // Predicated region
    $region26: #{tpu_custom_call.1} parent=1 // pred_check
      _
    $region27: #{tpu_custom_call.1} parent=1 // pred_check_branch
      %110 = sbr.rel (0) target = $region29
    $region28: #{tpu_custom_call.1} parent=1 // pred_region
      %112 = vsyncadd [#allocation7], 0
      %s114 = sshll.u32 %s2, 4
      %s115 = int_to_ptr.hbm [resolvable:$true] %s114
      %117 = dma.smem_to_hbm [#allocation6], 16, %s115, [#allocation7]
    $region29: #{tpu_custom_call.1} parent=1 // pred_fallthru
      _
    // Predicated region
    $region30: #{tpu_custom_call.1} parent=1 // pred_check
      _
    $region31: #{tpu_custom_call.1} parent=1 // pred_check_branch
      %119 = sbr.rel (0) target = $region33
    $region32: #{tpu_custom_call.1} parent=1 // pred_region
      %121 = dma.done [#allocation7], 16
    $region33: #{tpu_custom_call.1} parent=1 // pred_fallthru
      _
    %122 = sfence
    %123 = vsyncpa [#allocation7], 1

</llo_original>
